<compile_context>
chip_gen: v5e
topology: v5e:2x2
jax: 0.10.0
libtpu: 0.0.40
codegen_flags: <defaults>
</compile_context>

<pallas_src>
import jax
import jax.numpy as jnp
from jax.experimental import pallas as pl
from jax.experimental.pallas import tpu as pltpu


def _mlp_kernel(p_ref, x_ref, o_ref):
    # p_ref: SMEM (13,) f32 = [w1(2x3) row-major, b1(3), w2(3), b2(1)]
    # x_ref: VMEM (2, TR, L) -- feature axis first, batch laid out dense on
    #                           (sublane=TR, lane=L)
    # o_ref: VMEM (TR, L)
    x0 = x_ref[0]                              # (TR, L) dense slab
    x1 = x_ref[1]                              # (TR, L) dense slab
    acc = jnp.full_like(x0, p_ref[12])         # start from b2 (saves one add)
    for j in range(3):                         # hidden units, fully unrolled
        h = x0 * p_ref[j] + x1 * p_ref[3 + j] + p_ref[6 + j]   # VPU MACs
        h = jax.nn.sigmoid(h)                  # transcendental on the EUP slot
        acc = acc + h * p_ref[9 + j]
    o_ref[...] = acc


def simple_nn_forward(x, w1, b1, w2, b2, *, lane=1024, rows_per_tile=512):
    """x: (B, 2) f32; w1: (2, 3); b1: (3,) or (1, 3); w2: (3, 1); b2: (1,) or (1, 1)."""
    B = x.shape[0]

    # Pick a dense (rows, lanes) layout for the flattened batch axis.
    # L: multiple of 128 (lane axis), TR: multiple of 8 (sublane axis).
    L = lane if B >= lane else max(128, ((B + 127) // 128) * 128)
    r_needed = pl.cdiv(B, L)
    TR = min(rows_per_tile, ((r_needed + 7) // 8) * 8)
    n_tiles = pl.cdiv(r_needed, TR)
    R = n_tiles * TR
    b_pad = R * L

    # Feature-major presentation: transpose + zero-pad fuse into one HBM pass,
    # then a free row-major reshape to dense (2, R, L) slabs.
    xT = jnp.pad(x.astype(jnp.float32).T, ((0, 0), (0, b_pad - B)))
    xT = xT.reshape(2, R, L)

    # All 13 parameters flattened into one small SMEM-resident vector.
    params = jnp.concatenate(
        [w1.reshape(-1), b1.reshape(-1), w2.reshape(-1), b2.reshape(-1)]
    ).astype(jnp.float32)  # (13,)

    out = pl.pallas_call(
        _mlp_kernel,
        out_shape=jax.ShapeDtypeStruct((R, L), jnp.float32),
        grid=(n_tiles,),
        in_specs=[
            pl.BlockSpec(memory_space=pltpu.MemorySpace.SMEM),   # params, whole array
            pl.BlockSpec((2, TR, L), lambda i: (0, i, 0)),       # dense x slab
        ],
        out_specs=pl.BlockSpec((TR, L), lambda i: (i, 0)),       # dense out slab
        compiler_params=pltpu.CompilerParams(
            dimension_semantics=("parallel",),
            vmem_limit_bytes=32 * 1024 * 1024,  # ~12 MiB double-buffered footprint
        ),
    )(params, xT)

    flat = out.reshape(b_pad)
    return (flat if b_pad == B else flat[:B]).reshape(B, 1)


def init_params(key):
    # Deterministic parameter init (PyTorch-Linear-style uniform bounds).
    k1, k2, k3, k4 = jax.random.split(key, 4)
    bound1 = 1.0 / jnp.sqrt(2.0)   # fan_in = 2
    bound2 = 1.0 / jnp.sqrt(3.0)   # fan_in = 3
    w1 = jax.random.uniform(k1, (2, 3), jnp.float32, -bound1, bound1)
    b1 = jax.random.uniform(k2, (3,), jnp.float32, -bound1, bound1)
    w2 = jax.random.uniform(k3, (3, 1), jnp.float32, -bound2, bound2)
    b2 = jax.random.uniform(k4, (1,), jnp.float32, -bound2, bound2)
    return w1, b1, w2, b2


if __name__ == "__main__":
    root = jax.random.PRNGKey(0)
    kp, kx1, kx2 = jax.random.split(root, 3)
    w1, b1, w2, b2 = init_params(kp)

    def ref_fwd(x):
        return jax.nn.sigmoid(x @ w1 + b1) @ w2 + b2

    # Small deterministic test (batch = 8, in_features = 2), as the module implies.
    B = 8
    x = jax.random.normal(kx1, (B, 2), jnp.float32)
    out = simple_nn_forward(x, w1, b1, w2, b2)
    jax.block_until_ready(out)
    assert out.shape == (B, 1)
    assert jnp.allclose(out, ref_fwd(x), atol=1e-5, rtol=1e-5)

    # Ragged batch (exercises pad + multi-column slab path).
    B2 = 300
    x2 = jax.random.normal(kx2, (B2, 2), jnp.float32)
    out2 = simple_nn_forward(x2, w1, b1, w2, b2)
    jax.block_until_ready(out2)
    assert out2.shape == (B2, 1)
    assert jnp.allclose(out2, ref_fwd(x2), atol=1e-5, rtol=1e-5)

    print("KERNEL_OK")
</pallas_src>

<mosaic_0001>
module attributes {stable_mosaic.version = 11 : i64} {
  func.func @_mlp_kernel(%arg0: i32, %arg1: memref<13xf32, #tpu.memory_space<smem>>, %arg2: memref<2x8x128xf32, #tpu.memory_space<vmem>>, %arg3: memref<8x128xf32, #tpu.memory_space<vmem>>) attributes {dimension_semantics = [#tpu.dimension_semantics<parallel>], iteration_bounds = array<i64: 1>, scalar_prefetch = 0 : i64, scratch_operands = 0 : i64, tpu.core_type = #tpu.core_type<tc>, window_params = [{transform_indices = @transform_0, window_bounds = array<i64: 13>}, {transform_indices = @transform_1, window_bounds = array<i64: 2, 8, 128>}, {transform_indices = @transform_2, window_bounds = array<i64: 8, 128>}]} {
    %c0 = arith.constant 0 : index
    %c0_0 = arith.constant 0 : index
    %c0_1 = arith.constant 0 : index
    %0 = vector.load %arg2[%c0, %c0_0, %c0_1] : memref<2x8x128xf32, #tpu.memory_space<vmem>>, vector<1x8x128xf32>
    %1 = vector.shape_cast %0 : vector<1x8x128xf32> to vector<8x128xf32>
    %c1 = arith.constant 1 : index
    %c0_2 = arith.constant 0 : index
    %c0_3 = arith.constant 0 : index
    %2 = vector.load %arg2[%c1, %c0_2, %c0_3] : memref<2x8x128xf32, #tpu.memory_space<vmem>>, vector<1x8x128xf32>
    %3 = vector.shape_cast %2 : vector<1x8x128xf32> to vector<8x128xf32>
    %c12 = arith.constant 12 : index
    %4 = memref.load %arg1[%c12] : memref<13xf32, #tpu.memory_space<smem>>
    %5 = vector.broadcast %4 : f32 to vector<8x128xf32>
    %c0_4 = arith.constant 0 : index
    %6 = memref.load %arg1[%c0_4] : memref<13xf32, #tpu.memory_space<smem>>
    %7 = vector.broadcast %6 : f32 to vector<8x128xf32>
    %8 = arith.mulf %1, %7 : vector<8x128xf32>
    %c3 = arith.constant 3 : index
    %9 = memref.load %arg1[%c3] : memref<13xf32, #tpu.memory_space<smem>>
    %10 = vector.broadcast %9 : f32 to vector<8x128xf32>
    %11 = arith.mulf %3, %10 : vector<8x128xf32>
    %12 = arith.addf %8, %11 : vector<8x128xf32>
    %c6 = arith.constant 6 : index
    %13 = memref.load %arg1[%c6] : memref<13xf32, #tpu.memory_space<smem>>
    %14 = vector.broadcast %13 : f32 to vector<8x128xf32>
    %15 = arith.addf %12, %14 : vector<8x128xf32>
    %16 = arith.negf %15 : vector<8x128xf32>
    %17 = math.exp %16 : vector<8x128xf32>
    %cst = arith.constant 1.000000e+00 : f32
    %18 = vector.broadcast %cst : f32 to vector<8x128xf32>
    %19 = arith.addf %18, %17 : vector<8x128xf32>
    %20 = arith.divf %18, %19 : vector<8x128xf32>
    %c9 = arith.constant 9 : index
    %21 = memref.load %arg1[%c9] : memref<13xf32, #tpu.memory_space<smem>>
    %22 = vector.broadcast %21 : f32 to vector<8x128xf32>
    %23 = arith.mulf %20, %22 : vector<8x128xf32>
    %24 = arith.addf %5, %23 : vector<8x128xf32>
    %c1_5 = arith.constant 1 : index
    %25 = memref.load %arg1[%c1_5] : memref<13xf32, #tpu.memory_space<smem>>
    %26 = vector.broadcast %25 : f32 to vector<8x128xf32>
    %27 = arith.mulf %1, %26 : vector<8x128xf32>
    %c4 = arith.constant 4 : index
    %28 = memref.load %arg1[%c4] : memref<13xf32, #tpu.memory_space<smem>>
    %29 = vector.broadcast %28 : f32 to vector<8x128xf32>
    %30 = arith.mulf %3, %29 : vector<8x128xf32>
    %31 = arith.addf %27, %30 : vector<8x128xf32>
    %c7 = arith.constant 7 : index
    %32 = memref.load %arg1[%c7] : memref<13xf32, #tpu.memory_space<smem>>
    %33 = vector.broadcast %32 : f32 to vector<8x128xf32>
    %34 = arith.addf %31, %33 : vector<8x128xf32>
    %35 = arith.negf %34 : vector<8x128xf32>
    %36 = math.exp %35 : vector<8x128xf32>
    %cst_6 = arith.constant 1.000000e+00 : f32
    %37 = vector.broadcast %cst_6 : f32 to vector<8x128xf32>
    %38 = arith.addf %37, %36 : vector<8x128xf32>
    %39 = arith.divf %37, %38 : vector<8x128xf32>
    %c10 = arith.constant 10 : index
    %40 = memref.load %arg1[%c10] : memref<13xf32, #tpu.memory_space<smem>>
    %41 = vector.broadcast %40 : f32 to vector<8x128xf32>
    %42 = arith.mulf %39, %41 : vector<8x128xf32>
    %43 = arith.addf %24, %42 : vector<8x128xf32>
    %c2 = arith.constant 2 : index
    %44 = memref.load %arg1[%c2] : memref<13xf32, #tpu.memory_space<smem>>
    %45 = vector.broadcast %44 : f32 to vector<8x128xf32>
    %46 = arith.mulf %1, %45 : vector<8x128xf32>
    %c5 = arith.constant 5 : index
    %47 = memref.load %arg1[%c5] : memref<13xf32, #tpu.memory_space<smem>>
    %48 = vector.broadcast %47 : f32 to vector<8x128xf32>
    %49 = arith.mulf %3, %48 : vector<8x128xf32>
    %50 = arith.addf %46, %49 : vector<8x128xf32>
    %c8 = arith.constant 8 : index
    %51 = memref.load %arg1[%c8] : memref<13xf32, #tpu.memory_space<smem>>
    %52 = vector.broadcast %51 : f32 to vector<8x128xf32>
    %53 = arith.addf %50, %52 : vector<8x128xf32>
    %54 = arith.negf %53 : vector<8x128xf32>
    %55 = math.exp %54 : vector<8x128xf32>
    %cst_7 = arith.constant 1.000000e+00 : f32
    %56 = vector.broadcast %cst_7 : f32 to vector<8x128xf32>
    %57 = arith.addf %56, %55 : vector<8x128xf32>
    %58 = arith.divf %56, %57 : vector<8x128xf32>
    %c11 = arith.constant 11 : index
    %59 = memref.load %arg1[%c11] : memref<13xf32, #tpu.memory_space<smem>>
    %60 = vector.broadcast %59 : f32 to vector<8x128xf32>
    %61 = arith.mulf %58, %60 : vector<8x128xf32>
    %62 = arith.addf %43, %61 : vector<8x128xf32>
    %c0_8 = arith.constant 0 : index
    %c0_9 = arith.constant 0 : index
    %63 = vector.load %arg3[%c0_8, %c0_9] : memref<8x128xf32, #tpu.memory_space<vmem>>, vector<8x128xf32>
    tpu.vector_store %arg3[%c0_8, %c0_9], %62 {strides = array<i32>} : memref<8x128xf32, #tpu.memory_space<vmem>>, vector<8x128xf32>,
    return
  }
  func.func @transform_0(%arg0: i32) -> i32 {
    %c0_i32 = arith.constant 0 : i32
    %c0_i32_0 = arith.constant 0 : i32
    return %c0_i32 : i32
  }
  func.func @transform_1(%arg0: i32) -> (i32, i32, i32) {
    %c0_i32 = arith.constant 0 : i32
    %c0_i32_0 = arith.constant 0 : i32
    %c0_i32_1 = arith.constant 0 : i32
    return %c0_i32, %arg0, %c0_i32_0 : i32, i32, i32
  }
  func.func @transform_2(%arg0: i32) -> (i32, i32) {
    %c0_i32 = arith.constant 0 : i32
    %c0_i32_0 = arith.constant 0 : i32
    return %arg0, %c0_i32 : i32, i32
  }
}

</mosaic_0001>

<llo_original>
// kernel: tpu_custom_call.1
$region0: #{tpu_custom_call.1}
  #allocation0 [shape = 'u32[]', space=smem, size = 0x4, offset = 0x4, fixed_abs, tag = 'smem constant byte address 0x4 - core index']
  #allocation1 [shape = 'u32[72,128]{1,0:T(1,128)}', space=vmem, size = 0x9000, scoped, tag = 'internal scratch']
  %s0 = inlined_call_operand.hbm [shape: f32[13], index: 0, kind: input, shape index: {}]
  %s1 = inlined_call_operand.hbm [shape: f32[2,8,128], index: 1, kind: input, shape index: {}]
  %s2 = inlined_call_operand.hbm [shape: f32[8,128], index: 2, kind: output, shape index: {}]
  %s3 = sld [smem:[#allocation0]]
  $region26: #{tpu_custom_call.1} parent=0
    _
  %s5 = ssub.s32 1, %s3
  %s6 = scalar_select 0, %s5, %s3
  $region1: #{tpu_custom_call.1} parent=0
    #allocation2 [shape = 'u8[512]{0}', space=smem, size = 0x200, scoped, tag = 'input window, operand 0, single buffered']
    #allocation3 [shape = 's32[1]{0}', space=sflag, size = 0x4, scoped, tag = 'scoped memory for tpu_custom_call.1']
    #allocation4 [shape = 's32[1]{0}', space=sflag, size = 0x4, scoped, tag = 'scoped memory for tpu_custom_call.1']
    #allocation5 [shape = 's32[1]{0}', space=sflag, size = 0x4, scoped, tag = 'scoped memory for tpu_custom_call.1']
    #allocation6 [shape = 'u8[8192]{0}', space=vmem, size = 0x2000, scoped, tag = 'input window, operand 1, single buffered']
    #allocation7 [shape = 'u8[4096]{0}', space=vmem, size = 0x1000, scoped, tag = 'output window, operand 0, single buffered']
    %7 = vsyncpa [#allocation5], 0
    %8 = vsyncpa [#allocation3], 0
    %9 = vsyncpa [#allocation4], 0
    // Predicated region
    $region2: #{tpu_custom_call.1} parent=1 // pred_check
      _
    $region3: #{tpu_custom_call.1} parent=1 // pred_check_branch
      %11 = sbr.rel (0) target = $region5
    $region4: #{tpu_custom_call.1} parent=1 // pred_region
      %13 = vsyncadd [#allocation5], 0
      %s15 = sshll.u32 %s0, 4
      %s16 = int_to_ptr.hbm [resolvable:$true] %s15
      %18 = dma.hbm_to_smem %s16, 16, [#allocation2], [#allocation5]
    $region5: #{tpu_custom_call.1} parent=1 // pred_fallthru
      _
    // Predicated region
    $region6: #{tpu_custom_call.1} parent=1 // pred_check
      _
    $region7: #{tpu_custom_call.1} parent=1 // pred_check_branch
      %20 = sbr.rel (0) target = $region9
    $region8: #{tpu_custom_call.1} parent=1 // pred_region
      %22 = vsyncadd [#allocation3], 0
      %s23 = sshll.u32 %s1, 4
      %s24 = int_to_ptr.hbm [resolvable:$true] %s23
      %s25 = sshll.u32 [#allocation6], 4
      %s26 = int_to_ptr.vmem [resolvable:$true] %s25
      %31 = dma.hbm_to_vmem [thread:$0]  %s24, 256, %s26, [#allocation3], 128, 128, 8
    $region9: #{tpu_custom_call.1} parent=1 // pred_fallthru
      _
    // Predicated region
    $region10: #{tpu_custom_call.1} parent=1 // pred_check
      _
    $region11: #{tpu_custom_call.1} parent=1 // pred_check_branch
      %33 = sbr.rel (0) target = $region13
    $region12: #{tpu_custom_call.1} parent=1 // pred_region
      %35 = dma.done [#allocation5], 16
    $region13: #{tpu_custom_call.1} parent=1 // pred_fallthru
      _
    // Predicated region
    $region14: #{tpu_custom_call.1} parent=1 // pred_check
      _
    $region15: #{tpu_custom_call.1} parent=1 // pred_check_branch
      %37 = sbr.rel (0) target = $region17
    $region16: #{tpu_custom_call.1} parent=1 // pred_region
      %39 = dma.done [#allocation3], 256
    $region17: #{tpu_custom_call.1} parent=1 // pred_fallthru
      _
    %40 = sfence
    %v41 = vld [vmem:[#allocation6] sm:$0xff]
    %s42 = scalar_lea.vmem [#allocation6], 8
    %v43 = vld [vmem:[%s42] sm:$0xff]
    %s44 = sld [smem:[#allocation2 + $0xc]]
    %v45 = vstv %s44
    %s46 = sld [smem:[#allocation2]]
    %v47 = vstv %s46
    %v48 = vmul.f32 %v41, %v47
    %s49 = sld [smem:[#allocation2 + $0x3]]
    %v50 = vstv %s49
    %v51 = vmul.f32 %v43, %v50
    %v52 = vadd.f32 %v48, %v51
    %s53 = sld [smem:[#allocation2 + $0x6]]
    %v54 = vstv %s53
    %v55 = vadd.f32 %v52, %v54
    %v56 = vxor.u32 %v55, 2147483648
    %v57 = vmul.f32 %v56, 1.442695
    %v58 = vpow.pop %v57
    %v59 = vadd.f32 %v58, 1.0
    %v60 = vrcp.pop %v59
    %v61 = vmul.f32 %v59, %v60
    %v62 = vsub.f32 1.0, %v61
    %v63 = vmul.f32 %v60, %v62
    %v64 = vadd.f32 %v60, %v63
    %vm65 = vweird.f32 %v59
    %vm66 = vweird.f32 %v60
    %vm67 = vmor %vm65, %vm66
    %v68 = vsel %vm67, %v60, %v64
    %v69 = vand.u32 2147483647, %v59
    %vm70 = vcmp.eq.f32.partialorder %v69, 8.507059e+37
    %v71 = vand.u32 %v59, 2147483648
    %v72 = vor.u32 1.1754944e-38, %v71
    %v73 = vsel %vm70, %v72, %v68
    %v74 = vmul.f32 1.0, %v73
    %s75 = sld [smem:[#allocation2 + $0x9]]
    %v76 = vstv %s75
    %v77 = vmul.f32 %v74, %v76
    %v78 = vadd.f32 %v45, %v77
    %s79 = sld [smem:[#allocation2 + $0x1]]
    %v80 = vstv %s79
    %v81 = vmul.f32 %v41, %v80
    %s82 = sld [smem:[#allocation2 + $0x4]]
    %v83 = vstv %s82
    %v84 = vmul.f32 %v43, %v83
    %v85 = vadd.f32 %v81, %v84
    %s86 = sld [smem:[#allocation2 + $0x7]]
    %v87 = vstv %s86
    %v88 = vadd.f32 %v85, %v87
    %v89 = vxor.u32 %v88, 2147483648
    %v90 = vmul.f32 %v89, 1.442695
    %v91 = vpow.pop %v90
    %v92 = vadd.f32 %v91, 1.0
    %v93 = vrcp.pop %v92
    %v94 = vmul.f32 %v92, %v93
    %v95 = vsub.f32 1.0, %v94
    %v96 = vmul.f32 %v93, %v95
    %v97 = vadd.f32 %v93, %v96
    %vm98 = vweird.f32 %v92
    %vm99 = vweird.f32 %v93
    %vm100 = vmor %vm98, %vm99
    %v101 = vsel %vm100, %v93, %v97
    %v102 = vand.u32 2147483647, %v92
    %vm103 = vcmp.eq.f32.partialorder %v102, 8.507059e+37
    %v104 = vand.u32 %v92, 2147483648
    %v105 = vor.u32 1.1754944e-38, %v104
    %v106 = vsel %vm103, %v105, %v101
    %v107 = vmul.f32 1.0, %v106
    %s108 = sld [smem:[#allocation2 + $0xa]]
    %v109 = vstv %s108
    %v110 = vmul.f32 %v107, %v109
    %v111 = vadd.f32 %v78, %v110
    %s112 = sld [smem:[#allocation2 + $0x2]]
    %v113 = vstv %s112
    %v114 = vmul.f32 %v41, %v113
    %s115 = sld [smem:[#allocation2 + $0x5]]
    %v116 = vstv %s115
    %v117 = vmul.f32 %v43, %v116
    %v118 = vadd.f32 %v114, %v117
    %s119 = sld [smem:[#allocation2 + $0x8]]
    %v120 = vstv %s119
    %v121 = vadd.f32 %v118, %v120
    %v122 = vxor.u32 %v121, 2147483648
    %v123 = vmul.f32 %v122, 1.442695
    %v124 = vpow.pop %v123
    %v125 = vadd.f32 %v124, 1.0
    %v126 = vrcp.pop %v125
    %v127 = vmul.f32 %v125, %v126
    %v128 = vsub.f32 1.0, %v127
    %v129 = vmul.f32 %v126, %v128
    %v130 = vadd.f32 %v126, %v129
    %vm131 = vweird.f32 %v125
    %vm132 = vweird.f32 %v126
    %vm133 = vmor %vm131, %vm132
    %v134 = vsel %vm133, %v126, %v130
    %v135 = vand.u32 2147483647, %v125
    %vm136 = vcmp.eq.f32.partialorder %v135, 8.507059e+37
    %v137 = vand.u32 %v125, 2147483648
    %v138 = vor.u32 1.1754944e-38, %v137
    %v139 = vsel %vm136, %v138, %v134
    %v140 = vmul.f32 1.0, %v139
    %s141 = sld [smem:[#allocation2 + $0xb]]
    %v142 = vstv %s141
    %v143 = vmul.f32 %v140, %v142
    %v144 = vadd.f32 %v111, %v143
    %145 = vst [vmem:[#allocation7] sm:$0xff] %v144
    // Predicated region
    $region18: #{tpu_custom_call.1} parent=1 // pred_check
      _
    $region19: #{tpu_custom_call.1} parent=1 // pred_check_branch
      %147 = sbr.rel (0) target = $region21
    $region20: #{tpu_custom_call.1} parent=1 // pred_region
      %149 = vsyncadd [#allocation4], 0
      %s151 = sshll.u32 [#allocation7], 4
      %s152 = int_to_ptr.vmem [resolvable:$true] %s151
      %s153 = sshll.u32 %s2, 4
      %s154 = int_to_ptr.hbm [resolvable:$true] %s153
      %156 = dma.vmem_to_hbm [thread:$0]  %s152, 128, %s154, [#allocation4]
    $region21: #{tpu_custom_call.1} parent=1 // pred_fallthru
      _
    // Predicated region
    $region22: #{tpu_custom_call.1} parent=1 // pred_check
      _
    $region23: #{tpu_custom_call.1} parent=1 // pred_check_branch
      %158 = sbr.rel (0) target = $region25
    $region24: #{tpu_custom_call.1} parent=1 // pred_region
      %160 = dma.done [#allocation4], 128
    $region25: #{tpu_custom_call.1} parent=1 // pred_fallthru
      _
    %161 = vsyncpa [#allocation3], 1
    %162 = vsyncpa [#allocation4], 1
    %163 = vsyncpa [#allocation5], 1

</llo_original>
